<compile_context>
chip_gen: v7x
topology: tpu7x:2x2x1
jax: 0.10.0
libtpu: 0.0.40
codegen_flags: <defaults>
</compile_context>

<pallas_src>
import functools
import math

import jax
import jax.numpy as jnp
from jax import lax
from jax.experimental import pallas as pl
from jax.experimental.pallas import tpu as pltpu


def _gelu_tanh(x):
    # tanh-approximation GELU: 0.5*x*(1 + tanh(0.79788456*(x + 0.044715*x^3)))
    # |err| vs exact erf-GELU ~1e-3, well inside tolerance; tanh goes to the
    # EUP slot, the rest is ~8 cheap VALU ops per element.
    inner = 0.7978845608028654 * x * (1.0 + 0.044715 * x * x)
    return 0.5 * x * (1.0 + jnp.tanh(inner))


def _layer_norm_f32(x, gamma, beta, eps):
    # nn.LayerNorm semantics: biased variance, eps inside the sqrt.  f32 stats.
    mean = jnp.mean(x, axis=-1, keepdims=True)
    diff = x - mean
    var = jnp.mean(diff * diff, axis=-1, keepdims=True)
    inv = lax.rsqrt(var + jnp.float32(eps))           # EUP rsqrt, one per row
    return diff * inv * gamma + beta


def _mlp_kernel(x_ref, pin_ref, phid_ref, w1_ref, w2_ref, o_ref, *, eps, ew_dtype):
    f32 = jnp.float32
    bf16 = jnp.bfloat16

    x = x_ref[...].astype(f32)                        # (T, d_in)

    # Packed per-channel parameter slabs (loaded once per step, tiny).
    pin = pin_ref[...].astype(f32)                    # (8, d_in): g1, be1
    phid = phid_ref[...].astype(f32)                  # (8, hidden)
    g1, be1 = pin[0:1, :], pin[1:2, :]
    bb1, bb2 = phid[0:1, :], phid[1:2, :]
    g2, be2 = phid[2:3, :], phid[3:4, :]
    w3 = phid[4:5, :]
    b3 = phid[5:6, 0:1]                               # (1, 1) scalar bias

    # LayerNorm over d_in (f32).
    xn = _layer_norm_f32(x, g1, be1, eps)

    # fc1 on the MXU: bf16 operands, f32 accumulate.
    h1 = jnp.dot(xn.astype(bf16), w1_ref[...], preferred_element_type=f32) + bb1

    # GELU (elementwise compute dtype: bf16 on v6e/v7x, f32 elsewhere).
    h2 = _gelu_tanh(h1.astype(ew_dtype))              # (T, hidden)

    # fc2 + GELU + residual.
    h3 = jnp.dot(h2.astype(bf16), w2_ref[...], preferred_element_type=f32) + bb2
    h4 = _gelu_tanh(h3.astype(ew_dtype)) + h2

    # LayerNorm over hidden (stats in f32), then fc3 (hidden -> 1) as a
    # broadcast multiply + lane reduce (VPU + XLU) instead of an N=1 matmul.
    h4n = _layer_norm_f32(h4.astype(f32), g2, be2, eps)
    out = jnp.sum(h4n * w3, axis=-1, keepdims=True) + b3

    o_ref[...] = out.astype(o_ref.dtype)


def _default_elementwise_dtype():
    # bf16 elementwise only where the VPU/EUP are bf16-capable (v6e, v7x).
    try:
        kind = jax.devices()[0].device_kind.lower()
    except Exception:
        return jnp.float32
    if ("v6" in kind) or ("v7" in kind) or ("7x" in kind):
        return jnp.bfloat16
    return jnp.float32


def _choose_tile_rows(rows: int) -> int:
    # Large inputs: 2048-row tiles (1 MiB of x per buffer) amortize per-step
    # overhead while keeping >= 2 grid blocks so v7x can use both TensorCores.
    if rows >= 4096:
        return 2048
    if rows >= 16:
        half = -(-rows // 2)
        return ((half + 7) // 8) * 8          # 2 blocks, sublane-aligned
    if rows >= 8:
        return 8
    return rows                               # tiny input: one full-size block


def _pallas_mlp(x2, pin, phid, w1b, w2b, *, rows, tile_rows, d_in, hidden,
                eps, ew_dtype, out_dtype):
    n_blocks = pl.cdiv(rows, tile_rows)       # ragged final block is fine
    kernel = functools.partial(_mlp_kernel, eps=float(eps), ew_dtype=ew_dtype)
    return pl.pallas_call(
        kernel,
        out_shape=jax.ShapeDtypeStruct((rows, 1), out_dtype),
        grid_spec=pltpu.PrefetchScalarGridSpec(
            num_scalar_prefetch=0,
            grid=(n_blocks,),
            in_specs=[
                pl.BlockSpec((tile_rows, d_in), lambda i: (i, 0)),   # x rows
                pl.BlockSpec((8, d_in), lambda i: (0, 0)),           # LN1 slab
                pl.BlockSpec((8, hidden), lambda i: (0, 0)),         # hidden slab
                pl.BlockSpec((d_in, hidden), lambda i: (0, 0)),      # fc1 weight
                pl.BlockSpec((hidden, hidden), lambda i: (0, 0)),    # fc2 weight
            ],
            out_specs=pl.BlockSpec((tile_rows, 1), lambda i: (i, 0)),
        ),
        compiler_params=pltpu.CompilerParams(
            dimension_semantics=("parallel",),        # megacore-shard rows
            vmem_limit_bytes=32 * 1024 * 1024,        # safe on v5e/v6e/v7x
        ),
    )(x2, pin, phid, w1b, w2b)


def mlp_forward(x, gamma1, beta1, w1t, b1, w2t, b2, gamma2, beta2, w3, b3,
                *, eps=1e-5, tile_rows=None, elementwise_dtype=None):
    """Fused forward pass of the reference MLP.

    x: (..., d_in).  Weights pre-transposed to (in, out): w1t (d_in, hidden),
    w2t (hidden, hidden), w3 (hidden,); biases 1-D (b3 scalar).
    Returns (prod(leading_dims), 1), matching torch's x.reshape([-1, 1]).
    """
    f32 = jnp.float32
    d_in = x.shape[-1]
    hidden = w1t.shape[1]
    rows = int(math.prod(x.shape[:-1])) if x.ndim > 1 else 1
    x2 = x.reshape(rows, d_in)

    if elementwise_dtype is None:
        elementwise_dtype = _default_elementwise_dtype()

    if tile_rows is None:
        tile_rows = _choose_tile_rows(rows)
    tile_rows = int(tile_rows)
    if rows >= 8:
        tile_rows = max(8, min((tile_rows // 8) * 8, ((rows + 7) // 8) * 8))
    else:
        tile_rows = rows

    # Pack the ten small per-channel parameters into two sublane-aligned slabs.
    pin = (jnp.zeros((8, d_in), f32)
           .at[0].set(gamma1.reshape(-1).astype(f32))
           .at[1].set(beta1.reshape(-1).astype(f32)))
    phid = (jnp.zeros((8, hidden), f32)
            .at[0].set(b1.reshape(-1).astype(f32))
            .at[1].set(b2.reshape(-1).astype(f32))
            .at[2].set(gamma2.reshape(-1).astype(f32))
            .at[3].set(beta2.reshape(-1).astype(f32))
            .at[4].set(w3.reshape(-1).astype(f32))
            .at[5].set(jnp.asarray(b3, dtype=f32).reshape(())))
    w1b = w1t.astype(jnp.bfloat16)
    w2b = w2t.astype(jnp.bfloat16)

    common = dict(rows=rows, tile_rows=tile_rows, d_in=d_in, hidden=hidden,
                  eps=eps, out_dtype=x.dtype)
    try:
        return _pallas_mlp(x2, pin, phid, w1b, w2b,
                           ew_dtype=elementwise_dtype, **common)
    except Exception:
        # Safety net: if the bf16 elementwise path fails to lower on this
        # chip, fall back to the always-supported f32 path.
        if elementwise_dtype == jnp.float32:
            raise
        return _pallas_mlp(x2, pin, phid, w1b, w2b,
                           ew_dtype=jnp.float32, **common)


def _reference(x, gamma1, beta1, w1t, b1, w2t, b2, gamma2, beta2, w3, b3,
               eps=1e-5):
    # Pure-JAX reference reproducing the PyTorch module (exact GELU, nn.LayerNorm).
    hi = jax.lax.Precision.HIGHEST

    def ln(v, g, b):
        m = jnp.mean(v, axis=-1, keepdims=True)
        var = jnp.mean((v - m) ** 2, axis=-1, keepdims=True)
        return (v - m) / jnp.sqrt(var + eps) * g + b

    h = ln(x, gamma1, beta1)
    h1 = jnp.dot(h, w1t, precision=hi) + b1
    h2 = jax.nn.gelu(h1, approximate=False)
    h3 = jnp.dot(h2, w2t, precision=hi) + b2
    h4 = jax.nn.gelu(h3, approximate=False) + h2
    out = jnp.dot(ln(h4, gamma2, beta2), w3.reshape(-1, 1), precision=hi) + b3
    return out.reshape(-1, 1)


if __name__ == "__main__":
    key = jax.random.PRNGKey(0)
    ks = jax.random.split(key, 11)

    batch, seq = 2, 8
    d_in, hidden = 128, 64          # module defaults: input_dimension=128, hidden=64

    x = jax.random.normal(ks[0], (batch, seq, d_in), dtype=jnp.float32)

    # Linear params (pre-transposed to (in, out)); scaled like torch's init.
    w1t = jax.random.normal(ks[1], (d_in, hidden), jnp.float32) / jnp.sqrt(d_in)
    b1 = 0.1 * jax.random.normal(ks[2], (hidden,), jnp.float32)
    w2t = jax.random.normal(ks[3], (hidden, hidden), jnp.float32) / jnp.sqrt(hidden)
    b2 = 0.1 * jax.random.normal(ks[4], (hidden,), jnp.float32)
    w3 = jax.random.normal(ks[5], (hidden,), jnp.float32) / jnp.sqrt(hidden)
    b3 = 0.1 * jax.random.normal(ks[6], (), jnp.float32)
    # LayerNorm affine params (perturbed from ones/zeros to exercise the path).
    gamma1 = 1.0 + 0.1 * jax.random.normal(ks[7], (d_in,), jnp.float32)
    beta1 = 0.1 * jax.random.normal(ks[8], (d_in,), jnp.float32)
    gamma2 = 1.0 + 0.1 * jax.random.normal(ks[9], (hidden,), jnp.float32)
    beta2 = 0.1 * jax.random.normal(ks[10], (hidden,), jnp.float32)

    # Tolerance absorbs the tanh-GELU approximation (~1e-3) plus bf16 MXU
    # operands (and bf16 elementwise on v6e/v7x), all well within ~1-2%.
    ATOL = RTOL = 3e-2

    out = mlp_forward(x, gamma1, beta1, w1t, b1, w2t, b2, gamma2, beta2, w3, b3)
    out = jax.block_until_ready(out)
    ref = _reference(x, gamma1, beta1, w1t, b1, w2t, b2, gamma2, beta2, w3, b3)
    assert out.shape == (batch * seq, 1), out.shape
    assert jnp.allclose(out, ref, atol=ATOL, rtol=RTOL), "mismatch vs reference"

    # Ragged row count (rows % tile != 0) to exercise the no-pad / partial
    # final block path.
    x_r = jax.random.normal(jax.random.PRNGKey(1), (1, 50, d_in), jnp.float32)
    out_r = mlp_forward(x_r, gamma1, beta1, w1t, b1, w2t, b2, gamma2, beta2, w3, b3)
    out_r = jax.block_until_ready(out_r)
    ref_r = _reference(x_r, gamma1, beta1, w1t, b1, w2t, b2, gamma2, beta2, w3, b3)
    assert out_r.shape == (50, 1), out_r.shape
    assert jnp.allclose(out_r, ref_r, atol=ATOL, rtol=RTOL), "ragged mismatch"

    print("KERNEL_OK")
</pallas_src>

<mosaic_0001>
module attributes {stable_mosaic.version = 11 : i64} {
  func.func @_mlp_kernel(%arg0: i32, %arg1: memref<8x128xf32, #tpu.memory_space<vmem>>, %arg2: memref<8x128xf32, #tpu.memory_space<vmem>>, %arg3: memref<8x64xf32, #tpu.memory_space<vmem>>, %arg4: memref<128x64xbf16, #tpu.memory_space<vmem>>, %arg5: memref<64x64xbf16, #tpu.memory_space<vmem>>, %arg6: memref<8x1xf32, #tpu.memory_space<vmem>>) attributes {dimension_semantics = [#tpu.dimension_semantics<parallel>], iteration_bounds = array<i64: 2>, scalar_prefetch = 0 : i64, scratch_operands = 0 : i64, tpu.core_type = #tpu.core_type<tc>, window_params = [{transform_indices = @transform_0, window_bounds = array<i64: 8, 128>}, {pipeline_mode = #tpu.pipeline_mode<synchronous>, transform_indices = @transform_1, window_bounds = array<i64: 8, 128>}, {pipeline_mode = #tpu.pipeline_mode<synchronous>, transform_indices = @transform_2, window_bounds = array<i64: 8, 64>}, {pipeline_mode = #tpu.pipeline_mode<synchronous>, transform_indices = @transform_3, window_bounds = array<i64: 128, 64>}, {pipeline_mode = #tpu.pipeline_mode<synchronous>, transform_indices = @transform_4, window_bounds = array<i64: 64, 64>}, {transform_indices = @transform_5, window_bounds = array<i64: 8, 1>}]} {
    %c0 = arith.constant 0 : index
    %c0_0 = arith.constant 0 : index
    %0 = vector.load %arg1[%c0, %c0_0] : memref<8x128xf32, #tpu.memory_space<vmem>>, vector<8x128xf32>
    %c0_1 = arith.constant 0 : index
    %c0_2 = arith.constant 0 : index
    %1 = vector.load %arg2[%c0_1, %c0_2] : memref<8x128xf32, #tpu.memory_space<vmem>>, vector<8x128xf32>
    %c0_3 = arith.constant 0 : index
    %c0_4 = arith.constant 0 : index
    %2 = vector.load %arg3[%c0_3, %c0_4] : memref<8x64xf32, #tpu.memory_space<vmem>>, vector<8x64xf32>
    %3 = vector.extract_strided_slice %1 {offsets = [0, 0], sizes = [1, 128], strides = [1, 1]} : vector<8x128xf32> to vector<1x128xf32>
    %4 = vector.extract_strided_slice %1 {offsets = [1, 0], sizes = [1, 128], strides = [1, 1]} : vector<8x128xf32> to vector<1x128xf32>
    %5 = vector.extract_strided_slice %2 {offsets = [0, 0], sizes = [1, 64], strides = [1, 1]} : vector<8x64xf32> to vector<1x64xf32>
    %6 = vector.extract_strided_slice %2 {offsets = [1, 0], sizes = [1, 64], strides = [1, 1]} : vector<8x64xf32> to vector<1x64xf32>
    %7 = vector.extract_strided_slice %2 {offsets = [2, 0], sizes = [1, 64], strides = [1, 1]} : vector<8x64xf32> to vector<1x64xf32>
    %8 = vector.extract_strided_slice %2 {offsets = [3, 0], sizes = [1, 64], strides = [1, 1]} : vector<8x64xf32> to vector<1x64xf32>
    %9 = vector.extract_strided_slice %2 {offsets = [4, 0], sizes = [1, 64], strides = [1, 1]} : vector<8x64xf32> to vector<1x64xf32>
    %10 = vector.extract_strided_slice %2 {offsets = [5, 0], sizes = [1, 1], strides = [1, 1]} : vector<8x64xf32> to vector<1x1xf32>
    %cst = arith.constant dense<0.000000e+00> : vector<8xf32>
    %11 = vector.multi_reduction <add>, %0, %cst [1] : vector<8x128xf32> to vector<8xf32>
    %12 = vector.shape_cast %11 : vector<8xf32> to vector<8x1xf32>
    %cst_5 = arith.constant 1.280000e+02 : f32
    %13 = vector.broadcast %cst_5 : f32 to vector<8x1xf32>
    %14 = arith.divf %12, %13 : vector<8x1xf32>
    %15 = vector.broadcast %14 : vector<8x1xf32> to vector<8x128xf32>
    %16 = arith.subf %0, %15 : vector<8x128xf32>
    %17 = arith.mulf %16, %16 : vector<8x128xf32>
    %cst_6 = arith.constant dense<0.000000e+00> : vector<8xf32>
    %18 = vector.multi_reduction <add>, %17, %cst_6 [1] : vector<8x128xf32> to vector<8xf32>
    %19 = vector.shape_cast %18 : vector<8xf32> to vector<8x1xf32>
    %cst_7 = arith.constant 1.280000e+02 : f32
    %20 = vector.broadcast %cst_7 : f32 to vector<8x1xf32>
    %21 = arith.divf %19, %20 : vector<8x1xf32>
    %cst_8 = arith.constant 9.99999974E-6 : f32
    %22 = vector.broadcast %cst_8 : f32 to vector<8x1xf32>
    %23 = arith.addf %21, %22 : vector<8x1xf32>
    %24 = math.rsqrt %23 : vector<8x1xf32>
    %25 = vector.broadcast %24 : vector<8x1xf32> to vector<8x128xf32>
    %26 = arith.mulf %16, %25 : vector<8x128xf32>
    %27 = vector.broadcast %3 : vector<1x128xf32> to vector<8x128xf32>
    %28 = arith.mulf %26, %27 : vector<8x128xf32>
    %29 = vector.broadcast %4 : vector<1x128xf32> to vector<8x128xf32>
    %30 = arith.addf %28, %29 : vector<8x128xf32>
    %31 = arith.truncf %30 : vector<8x128xf32> to vector<8x128xbf16>
    %c0_9 = arith.constant 0 : index
    %c0_10 = arith.constant 0 : index
    %32 = vector.load %arg4[%c0_9, %c0_10] : memref<128x64xbf16, #tpu.memory_space<vmem>>, vector<128x64xbf16>
    %cst_11 = arith.constant dense<0.000000e+00> : vector<8x64xf32>
    %33 = tpu.matmul %31, %32, %cst_11 {dimension_numbers = #tpu.dot_dimension_numbers<[1], [0], [0], [1], [0, 0, 1, 1], [], []>} : vector<8x128xbf16>, vector<128x64xbf16>, vector<8x64xf32> -> vector<8x64xf32>
    %34 = vector.broadcast %5 : vector<1x64xf32> to vector<8x64xf32>
    %35 = arith.addf %33, %34 : vector<8x64xf32>
    %cst_12 = arith.constant 0.797884583 : f32
    %36 = vector.broadcast %cst_12 : f32 to vector<8x64xf32>
    %37 = arith.mulf %36, %35 : vector<8x64xf32>
    %cst_13 = arith.constant 4.471500e-02 : f32
    %38 = vector.broadcast %cst_13 : f32 to vector<8x64xf32>
    %39 = arith.mulf %38, %35 : vector<8x64xf32>
    %40 = arith.mulf %39, %35 : vector<8x64xf32>
    %cst_14 = arith.constant 1.000000e+00 : f32
    %41 = vector.broadcast %cst_14 : f32 to vector<8x64xf32>
    %42 = arith.addf %41, %40 : vector<8x64xf32>
    %43 = arith.mulf %37, %42 : vector<8x64xf32>
    %cst_15 = arith.constant 5.000000e-01 : f32
    %44 = vector.broadcast %cst_15 : f32 to vector<8x64xf32>
    %45 = arith.mulf %44, %35 : vector<8x64xf32>
    %46 = math.tanh %43 : vector<8x64xf32>
    %cst_16 = arith.constant 1.000000e+00 : f32
    %47 = vector.broadcast %cst_16 : f32 to vector<8x64xf32>
    %48 = arith.addf %47, %46 : vector<8x64xf32>
    %49 = arith.mulf %45, %48 : vector<8x64xf32>
    %50 = arith.truncf %49 : vector<8x64xf32> to vector<8x64xbf16>
    %c0_17 = arith.constant 0 : index
    %c0_18 = arith.constant 0 : index
    %51 = vector.load %arg5[%c0_17, %c0_18] : memref<64x64xbf16, #tpu.memory_space<vmem>>, vector<64x64xbf16>
    %cst_19 = arith.constant dense<0.000000e+00> : vector<8x64xf32>
    %52 = tpu.matmul %50, %51, %cst_19 {dimension_numbers = #tpu.dot_dimension_numbers<[1], [0], [0], [1], [0, 0, 1, 1], [], []>} : vector<8x64xbf16>, vector<64x64xbf16>, vector<8x64xf32> -> vector<8x64xf32>
    %53 = vector.broadcast %6 : vector<1x64xf32> to vector<8x64xf32>
    %54 = arith.addf %52, %53 : vector<8x64xf32>
    %cst_20 = arith.constant 0.797884583 : f32
    %55 = vector.broadcast %cst_20 : f32 to vector<8x64xf32>
    %56 = arith.mulf %55, %54 : vector<8x64xf32>
    %cst_21 = arith.constant 4.471500e-02 : f32
    %57 = vector.broadcast %cst_21 : f32 to vector<8x64xf32>
    %58 = arith.mulf %57, %54 : vector<8x64xf32>
    %59 = arith.mulf %58, %54 : vector<8x64xf32>
    %cst_22 = arith.constant 1.000000e+00 : f32
    %60 = vector.broadcast %cst_22 : f32 to vector<8x64xf32>
    %61 = arith.addf %60, %59 : vector<8x64xf32>
    %62 = arith.mulf %56, %61 : vector<8x64xf32>
    %cst_23 = arith.constant 5.000000e-01 : f32
    %63 = vector.broadcast %cst_23 : f32 to vector<8x64xf32>
    %64 = arith.mulf %63, %54 : vector<8x64xf32>
    %65 = math.tanh %62 : vector<8x64xf32>
    %cst_24 = arith.constant 1.000000e+00 : f32
    %66 = vector.broadcast %cst_24 : f32 to vector<8x64xf32>
    %67 = arith.addf %66, %65 : vector<8x64xf32>
    %68 = arith.mulf %64, %67 : vector<8x64xf32>
    %69 = arith.addf %68, %49 : vector<8x64xf32>
    %cst_25 = arith.constant dense<0.000000e+00> : vector<8xf32>
    %70 = vector.multi_reduction <add>, %69, %cst_25 [1] : vector<8x64xf32> to vector<8xf32>
    %71 = vector.shape_cast %70 : vector<8xf32> to vector<8x1xf32>
    %cst_26 = arith.constant 6.400000e+01 : f32
    %72 = vector.broadcast %cst_26 : f32 to vector<8x1xf32>
    %73 = arith.divf %71, %72 : vector<8x1xf32>
    %74 = vector.broadcast %73 : vector<8x1xf32> to vector<8x64xf32>
    %75 = arith.subf %69, %74 : vector<8x64xf32>
    %76 = arith.mulf %75, %75 : vector<8x64xf32>
    %cst_27 = arith.constant dense<0.000000e+00> : vector<8xf32>
    %77 = vector.multi_reduction <add>, %76, %cst_27 [1] : vector<8x64xf32> to vector<8xf32>
    %78 = vector.shape_cast %77 : vector<8xf32> to vector<8x1xf32>
    %cst_28 = arith.constant 6.400000e+01 : f32
    %79 = vector.broadcast %cst_28 : f32 to vector<8x1xf32>
    %80 = arith.divf %78, %79 : vector<8x1xf32>
    %cst_29 = arith.constant 9.99999974E-6 : f32
    %81 = vector.broadcast %cst_29 : f32 to vector<8x1xf32>
    %82 = arith.addf %80, %81 : vector<8x1xf32>
    %83 = math.rsqrt %82 : vector<8x1xf32>
    %84 = vector.broadcast %83 : vector<8x1xf32> to vector<8x64xf32>
    %85 = arith.mulf %75, %84 : vector<8x64xf32>
    %86 = vector.broadcast %7 : vector<1x64xf32> to vector<8x64xf32>
    %87 = arith.mulf %85, %86 : vector<8x64xf32>
    %88 = vector.broadcast %8 : vector<1x64xf32> to vector<8x64xf32>
    %89 = arith.addf %87, %88 : vector<8x64xf32>
    %90 = vector.broadcast %9 : vector<1x64xf32> to vector<8x64xf32>
    %91 = arith.mulf %89, %90 : vector<8x64xf32>
    %cst_30 = arith.constant dense<0.000000e+00> : vector<8xf32>
    %92 = vector.multi_reduction <add>, %91, %cst_30 [1] : vector<8x64xf32> to vector<8xf32>
    %93 = vector.shape_cast %92 : vector<8xf32> to vector<8x1xf32>
    %94 = vector.broadcast %10 : vector<1x1xf32> to vector<8x1xf32>
    %95 = arith.addf %93, %94 : vector<8x1xf32>
    %c0_31 = arith.constant 0 : index
    %c0_32 = arith.constant 0 : index
    %96 = vector.load %arg6[%c0_31, %c0_32] : memref<8x1xf32, #tpu.memory_space<vmem>>, vector<8x1xf32>
    tpu.vector_store %arg6[%c0_31, %c0_32], %95 {strides = array<i32>} : memref<8x1xf32, #tpu.memory_space<vmem>>, vector<8x1xf32>,
    return
  }
  func.func @transform_0(%arg0: i32) -> (i32, i32) {
    %c0_i32 = arith.constant 0 : i32
    %c0_i32_0 = arith.constant 0 : i32
    return %arg0, %c0_i32 : i32, i32
  }
  func.func @transform_1(%arg0: i32) -> (i32, i32) {
    %c0_i32 = arith.constant 0 : i32
    %c0_i32_0 = arith.constant 0 : i32
    %c0_i32_1 = arith.constant 0 : i32
    return %c0_i32, %c0_i32_0 : i32, i32
  }
  func.func @transform_2(%arg0: i32) -> (i32, i32) {
    %c0_i32 = arith.constant 0 : i32
    %c0_i32_0 = arith.constant 0 : i32
    %c0_i32_1 = arith.constant 0 : i32
    return %c0_i32, %c0_i32_0 : i32, i32
  }
  func.func @transform_3(%arg0: i32) -> (i32, i32) {
    %c0_i32 = arith.constant 0 : i32
    %c0_i32_0 = arith.constant 0 : i32
    %c0_i32_1 = arith.constant 0 : i32
    return %c0_i32, %c0_i32_0 : i32, i32
  }
  func.func @transform_4(%arg0: i32) -> (i32, i32) {
    %c0_i32 = arith.constant 0 : i32
    %c0_i32_0 = arith.constant 0 : i32
    %c0_i32_1 = arith.constant 0 : i32
    return %c0_i32, %c0_i32_0 : i32, i32
  }
  func.func @transform_5(%arg0: i32) -> (i32, i32) {
    %c0_i32 = arith.constant 0 : i32
    %c0_i32_0 = arith.constant 0 : i32
    return %arg0, %c0_i32 : i32, i32
  }
}

</mosaic_0001>

<llo_original>
// kernel: tpu_custom_call.1
$region0: #{tpu_custom_call.1}
  #allocation0 [shape = 'u32[]', space=smem, size = 0x4, offset = 0x4, fixed_abs, tag = 'smem constant byte address 0x4 - core index']
  #allocation1 [shape = 'u32[144,128]{1,0:T(1,128)}', space=vmem, size = 0x12000, scoped, tag = 'internal scratch']
  %s0 = inlined_call_operand.vmem [shape: f32[16,128], index: 0, kind: input, shape index: {}]
  %s1 = inlined_call_operand.vmem [shape: f32[8,128], index: 1, kind: input, shape index: {}]
  %s2 = inlined_call_operand.vmem [shape: f32[8,64], index: 2, kind: input, shape index: {}]
  %s3 = inlined_call_operand.vmem [shape: bf16[128,64], index: 3, kind: input, shape index: {}]
  %s4 = inlined_call_operand.vmem [shape: bf16[64,64], index: 4, kind: input, shape index: {}]
  %s5 = inlined_call_operand.vmem [shape: f32[16,1], index: 5, kind: output, shape index: {}]
  %s6 = sld [smem:[#allocation0]]
  $region53: #{tpu_custom_call.1} parent=0
    _
  %s8 = ssub.s32 1, %s6
  %s9 = scalar_select 0, %s8, %s6
  loop: start=0, step=1, limit=4
  $region2: #{tpu_custom_call.1} parent=0 // loop_pre_header
    _
  $region3: #{tpu_custom_call.1} parent=0 // loop_header
    %s11 = sphi 0, %s15
    %p12 = scmp.ge.s32.totalorder %s11, 4
    %s21 = sphi 0, %s23
    %s24 = sphi 0, %s21
    %s25 = sphi 0, %s24
    %s41 = sphi 0, %s25
    %s45 = sphi 0, %s45
    %s47 = sphi 0, %s45
    %s48 = sphi 0, %s47
    %s62 = sphi 0, %s48
    %s66 = sphi 0, %s66
    %s68 = sphi 0, %s66
    %s69 = sphi 0, %s68
    %s83 = sphi 0, %s69
    %s87 = sphi 0, %s87
    %s89 = sphi 0, %s87
    %s90 = sphi 0, %s89
    %s104 = sphi 0, %s90
    %s108 = sphi 0, %s108
    %s110 = sphi 0, %s108
    %s111 = sphi 0, %s110
    %s125 = sphi 0, %s111
    %s131 = sphi 0, %s133
    %s134 = sphi 0, %s131
    %s135 = sphi 0, %s134
    %s151 = sphi 0, %s135
  $region4: #{tpu_custom_call.1} parent=0 // loop_header_branch
    %14 = sbr.rel (%p12) target = $region8
  $region5: #{tpu_custom_call.1} parent=0 // loop_body
    %s16 = ssub.s32 %s11, 1
    %s17 = ssub.s32 %s11, 2
    %s18 = sadd.s32 %s11, 1
    %s19 = ssub.s32 %s11, %s18
    %p20 = scmp.eq.s32.totalorder %s19, 0
    %s22 = sadd.s32 %s21, 1
    %s23 = scalar_select %p20, %s21, %s22
    %p26 = pneg %p20
    %p27 = scmp.eq.s32.totalorder %s11, 1
    %p28 = por %p26, %p27
    %p29 = scmp.ne.s32.totalorder %s21, %s24
    %p30 = scmp.eq.s32.totalorder %s11, 0
    %p31 = por %p29, %p30
    %p32 = scmp.ne.s32.totalorder %s21, %s24
    %p33 = scmp.eq.s32.totalorder %s16, 1
    %p34 = por %p32, %p33
    %p35 = scmp.ne.s32.totalorder %s24, %s25
    %p36 = scmp.eq.s32.totalorder %s16, 0
    %p37 = por %p35, %p36
    %p38 = scmp.ne.s32.totalorder %s24, %s25
    %p39 = scmp.eq.s32.totalorder %s17, 1
    %p40 = por %p38, %p39
    %p42 = scmp.ne.s32.totalorder %s25, %s41
    %p43 = scmp.eq.s32.totalorder %s17, 0
    %p44 = por %p42, %p43
    %s46 = sadd.s32 %s45, 1
    %p49 = scmp.eq.s32.totalorder %s11, 1
    %p50 = scmp.ne.s32.totalorder %s45, %s47
    %p51 = scmp.eq.s32.totalorder %s11, 0
    %p52 = por %p50, %p51
    %p53 = scmp.ne.s32.totalorder %s45, %s47
    %p54 = scmp.eq.s32.totalorder %s16, 1
    %p55 = por %p53, %p54
    %p56 = scmp.ne.s32.totalorder %s47, %s48
    %p57 = scmp.eq.s32.totalorder %s16, 0
    %p58 = por %p56, %p57
    %p59 = scmp.ne.s32.totalorder %s47, %s48
    %p60 = scmp.eq.s32.totalorder %s17, 1
    %p61 = por %p59, %p60
    %p63 = scmp.ne.s32.totalorder %s48, %s62
    %p64 = scmp.eq.s32.totalorder %s17, 0
    %p65 = por %p63, %p64
    %s67 = sadd.s32 %s66, 1
    %p70 = scmp.eq.s32.totalorder %s11, 1
    %p71 = scmp.ne.s32.totalorder %s66, %s68
    %p72 = scmp.eq.s32.totalorder %s11, 0
    %p73 = por %p71, %p72
    %p74 = scmp.ne.s32.totalorder %s66, %s68
    %p75 = scmp.eq.s32.totalorder %s16, 1
    %p76 = por %p74, %p75
    %p77 = scmp.ne.s32.totalorder %s68, %s69
    %p78 = scmp.eq.s32.totalorder %s16, 0
    %p79 = por %p77, %p78
    %p80 = scmp.ne.s32.totalorder %s68, %s69
    %p81 = scmp.eq.s32.totalorder %s17, 1
    %p82 = por %p80, %p81
    %p84 = scmp.ne.s32.totalorder %s69, %s83
    %p85 = scmp.eq.s32.totalorder %s17, 0
    %p86 = por %p84, %p85
    %s88 = sadd.s32 %s87, 1
    %p91 = scmp.eq.s32.totalorder %s11, 1
    %p92 = scmp.ne.s32.totalorder %s87, %s89
    %p93 = scmp.eq.s32.totalorder %s11, 0
    %p94 = por %p92, %p93
    %p95 = scmp.ne.s32.totalorder %s87, %s89
    %p96 = scmp.eq.s32.totalorder %s16, 1
    %p97 = por %p95, %p96
    %p98 = scmp.ne.s32.totalorder %s89, %s90
    %p99 = scmp.eq.s32.totalorder %s16, 0
    %p100 = por %p98, %p99
    %p101 = scmp.ne.s32.totalorder %s89, %s90
    %p102 = scmp.eq.s32.totalorder %s17, 1
    %p103 = por %p101, %p102
    %p105 = scmp.ne.s32.totalorder %s90, %s104
    %p106 = scmp.eq.s32.totalorder %s17, 0
    %p107 = por %p105, %p106
    %s109 = sadd.s32 %s108, 1
    %p112 = scmp.eq.s32.totalorder %s11, 1
    %p113 = scmp.ne.s32.totalorder %s108, %s110
    %p114 = scmp.eq.s32.totalorder %s11, 0
    %p115 = por %p113, %p114
    %p116 = scmp.ne.s32.totalorder %s108, %s110
    %p117 = scmp.eq.s32.totalorder %s16, 1
    %p118 = por %p116, %p117
    %p119 = scmp.ne.s32.totalorder %s110, %s111
    %p120 = scmp.eq.s32.totalorder %s16, 0
    %p121 = por %p119, %p120
    %p122 = scmp.ne.s32.totalorder %s110, %s111
    %p123 = scmp.eq.s32.totalorder %s17, 1
    %p124 = por %p122, %p123
    %p126 = scmp.ne.s32.totalorder %s111, %s125
    %p127 = scmp.eq.s32.totalorder %s17, 0
    %p128 = por %p126, %p127
    %s129 = ssub.s32 %s11, %s18
    %p130 = scmp.eq.s32.totalorder %s129, 0
    %s132 = sadd.s32 %s131, 1
    %s133 = scalar_select %p130, %s131, %s132
    %p136 = pneg %p130
    %p137 = scmp.eq.s32.totalorder %s11, 1
    %p138 = por %p136, %p137
    %p139 = scmp.ne.s32.totalorder %s131, %s134
    %p140 = scmp.eq.s32.totalorder %s11, 0
    %p141 = por %p139, %p140
    %p142 = scmp.ne.s32.totalorder %s131, %s134
    %p143 = scmp.eq.s32.totalorder %s16, 1
    %p144 = por %p142, %p143
    %p145 = scmp.ne.s32.totalorder %s134, %s135
    %p146 = scmp.eq.s32.totalorder %s16, 0
    %p147 = por %p145, %p146
    %p148 = scmp.ne.s32.totalorder %s134, %s135
    %p149 = scmp.eq.s32.totalorder %s17, 1
    %p150 = por %p148, %p149
    %p152 = scmp.ne.s32.totalorder %s135, %s151
    %p153 = scmp.eq.s32.totalorder %s17, 0
    %p154 = por %p152, %p153
    %p155 = scmp.le.s32.totalorder 1, %s11
    %p156 = scmp.lt.s32.totalorder %s11, 3
    %p157 = pnand %p155, %p156
    %p158 = pneg %p157
    // Predicated region
    $region9: #{tpu_custom_call.1} parent=5 // pred_check
      _
    $region10: #{tpu_custom_call.1} parent=5 // pred_check_branch
      %160 = sbr.rel (%p157) target = $region12
    $region11: #{tpu_custom_call.1} parent=5 // pred_region
      %s161 = ssub.s32 %s11, 1
      // Predicated region
      $region13: #{tpu_custom_call.1} parent=11 // pred_check
        %p162 = pneg %p58
      $region14: #{tpu_custom_call.1} parent=11 // pred_check_branch
        %164 = sbr.rel (%p162) target = $region16
      $region15: #{tpu_custom_call.1} parent=11 // pred_region
        _
      $region16: #{tpu_custom_call.1} parent=11 // pred_fallthru
        _
      // Predicated region
      $region17: #{tpu_custom_call.1} parent=11 // pred_check
        %p165 = pneg %p79
      $region18: #{tpu_custom_call.1} parent=11 // pred_check_branch
        %167 = sbr.rel (%p165) target = $region20
      $region19: #{tpu_custom_call.1} parent=11 // pred_region
        _
      $region20: #{tpu_custom_call.1} parent=11 // pred_fallthru
        _
      // Predicated region
      $region21: #{tpu_custom_call.1} parent=11 // pred_check
        %p168 = pneg %p100
      $region22: #{tpu_custom_call.1} parent=11 // pred_check_branch
        %170 = sbr.rel (%p168) target = $region24
      $region23: #{tpu_custom_call.1} parent=11 // pred_region
        _
      $region24: #{tpu_custom_call.1} parent=11 // pred_fallthru
        _
      // Predicated region
      $region25: #{tpu_custom_call.1} parent=11 // pred_check
        %p171 = pneg %p121
      $region26: #{tpu_custom_call.1} parent=11 // pred_check_branch
        %173 = sbr.rel (%p171) target = $region28
      $region27: #{tpu_custom_call.1} parent=11 // pred_region
        _
      $region28: #{tpu_custom_call.1} parent=11 // pred_fallthru
        _
    $region12: #{tpu_custom_call.1} parent=5 // pred_fallthru
      _
    %p174 = scmp.lt.s32.totalorder %s11, 2
    // Predicated region
    $region29: #{tpu_custom_call.1} parent=5 // pred_check
      %p175 = pneg %p174
    $region30: #{tpu_custom_call.1} parent=5 // pred_check_branch
      %177 = sbr.rel (%p175) target = $region32
    $region31: #{tpu_custom_call.1} parent=5 // pred_region
      // Predicated region
      $region33: #{tpu_custom_call.1} parent=31 // pred_check
        %p178 = pneg %p31
      $region34: #{tpu_custom_call.1} parent=31 // pred_check_branch
        %180 = sbr.rel (%p178) target = $region36
      $region35: #{tpu_custom_call.1} parent=31 // pred_region
        %p181 = scmp.lt.s32.totalorder %s11, 1
        %s182 = scalar_select %p181, %s11, 1
        %s183 = smul.addr %s182, 8
        %s184 = scalar_lea.vmem %s0, %s183
      $region36: #{tpu_custom_call.1} parent=31 // pred_fallthru
        _
    $region32: #{tpu_custom_call.1} parent=5 // pred_fallthru
      _
    %p185 = scmp.le.s32.totalorder 1, %s11
    %p186 = scmp.lt.s32.totalorder %s11, 3
    %p187 = pnand %p185, %p186
    %p188 = pneg %p187
    // Predicated region
    $region37: #{tpu_custom_call.1} parent=5 // pred_check
      _
    $region38: #{tpu_custom_call.1} parent=5 // pred_check_branch
      %190 = sbr.rel (%p187) target = $region40
    $region39: #{tpu_custom_call.1} parent=5 // pred_region
      %s191 = ssub.s32 %s11, 1
      %p192 = scmp.lt.s32.totalorder %s16, 1
      %s193 = scalar_select %p192, %s16, 1
      %s194 = smul.addr %s193, 8
      %s195 = scalar_lea.vmem %s0, %s194
      %p196 = pneg %p37
      %p197 = pneg %p34
      %p198 = pneg %p58
      %p199 = pneg %p55
      %p200 = pneg %p79
      %p201 = pneg %p76
      %p202 = pneg %p100
      %p203 = pneg %p97
      %p204 = pneg %p121
      %p205 = pneg %p118
      %p206 = pneg %p147
      %p207 = pneg %p144
      %p208 = scmp.lt.s32.totalorder %s16, 1
      %s209 = scalar_select %p208, %s16, 1
      %s210 = smul.addr %s209, 8
      %s211 = scalar_lea.vmem %s5, %s210
      %p212 = scmp.lt.s32.totalorder %s16, 1
      %s213 = scalar_select %p212, %s16, 1
      %s214 = smul.addr %s213, 8
      %s215 = scalar_lea.vmem %s0, %s214
      %p216 = scmp.lt.s32.totalorder %s16, 1
      %s217 = scalar_select %p216, %s16, 1
      %s218 = smul.addr %s217, 8
      %s219 = scalar_lea.vmem %s5, %s218
      %v221 = vld [vmem:[%s215] sm:$0xff]
      %v222 = vld [vmem:[%s1] sm:$0xff]
      %v223 = vld [vmem:[%s2] sm:$0xff]
      %224 = vadd.xlane.f32.xlu0 %v221
      %v225 = vpop.xlane.xlu0 %224
      %v226 = vrcp.pop 128.0
      %v227 = vmul.f32 %v225, %v226
      %v228 = vsub.f32 %v221, %v227
      %v229 = vmul.f32 %v228, %v228
      %230 = vadd.xlane.f32.xlu0 %v229
      %v231 = vpop.xlane.xlu0 %230
      %v232 = vmul.f32 %v231, %v226
      %v233 = vadd.f32 %v232, 1e-05
      %v234 = vrsqrt.pop %v233
      %v235 = vmul.f32 %v228, %v234
      %v236 = vlaneseq
      %v237 = vshrl.u32 %v236, 7
      %v238 = vsub.s32 0, %v237
      %v239 = vrot.slane %v222, %v238
      %v240 = vmul.f32 %v235, %v239
      %v241 = vlaneseq
      %v242 = vshrl.u32 %v241, 7
      %v243 = vsub.s32 1, %v242
      %v244 = vrot.slane %v222, %v243
      %v245 = vadd.f32 %v240, %v244
      %v246 = vpack.c.bf16 %v245, %v245
      %v247 = vld [vmem:[%s3] sm:$0xf]
      %v248 = vld [vmem:[%s3 + $0x4] sm:$0xf]
      %v249 = vld [vmem:[%s3 + $0x8] sm:$0xf]
      %v250 = vld [vmem:[%s3 + $0xc] sm:$0xf]
      %v251 = vld [vmem:[%s3 + $0x10] sm:$0xf]
      %v252 = vld [vmem:[%s3 + $0x14] sm:$0xf]
      %v253 = vld [vmem:[%s3 + $0x18] sm:$0xf]
      %v254 = vld [vmem:[%s3 + $0x1c] sm:$0xf]
      %v255 = vld [vmem:[%s3 + $0x20] sm:$0xf]
      %v256 = vld [vmem:[%s3 + $0x24] sm:$0xf]
      %v257 = vld [vmem:[%s3 + $0x28] sm:$0xf]
      %v258 = vld [vmem:[%s3 + $0x2c] sm:$0xf]
      %v259 = vld [vmem:[%s3 + $0x30] sm:$0xf]
      %v260 = vld [vmem:[%s3 + $0x34] sm:$0xf]
      %v261 = vld [vmem:[%s3 + $0x38] sm:$0xf]
      %v262 = vld [vmem:[%s3 + $0x3c] sm:$0xf]
      %v263 = vlaneseq
      %v264 = vshrl.u32 %v263, 7
      %v265 = vsub.s32 0, %v264
      %v266 = vrot.slane %v223, %v265
      %v283 = vunpack.c.l.b16 %v247
      %v284 = vunpack.c.l.b16 %v248
      %v285 = vunpack.c.l.b16 %v249
      %v286 = vunpack.c.l.b16 %v250
      %v287 = vunpack.c.l.b16 %v251
      %v288 = vunpack.c.l.b16 %v252
      %v289 = vunpack.c.l.b16 %v253
      %v290 = vunpack.c.l.b16 %v254
      %v291 = vunpack.c.l.b16 %v255
      %v292 = vunpack.c.l.b16 %v256
      %v293 = vunpack.c.l.b16 %v257
      %v294 = vunpack.c.l.b16 %v258
      %v295 = vunpack.c.l.b16 %v259
      %v296 = vunpack.c.l.b16 %v260
      %v297 = vunpack.c.l.b16 %v261
      %v298 = vunpack.c.l.b16 %v262
      %v299 = vpack.c.b16 %v284, %v283
      %v300 = vpack.c.b16 %v286, %v285
      %v301 = vpack.c.b16 %v288, %v287
      %v302 = vpack.c.b16 %v290, %v289
      %v303 = vpack.c.b16 %v292, %v291
      %v304 = vpack.c.b16 %v294, %v293
      %v305 = vpack.c.b16 %v296, %v295
      %v306 = vpack.c.b16 %v298, %v297
      %315 = vmatprep.subr.bf16.mxu0 0
      %316 = vmatpush1.bf16.msra.mxu0 %v299
      %317 = vmatprep.subr.bf16.mxu0 0
      %318 = vmatpush1.bf16.msra.mxu0 %v300
      %319 = vmatprep.subr.bf16.mxu0 0
      %320 = vmatpush1.bf16.msra.mxu0 %v301
      %321 = vmatprep.subr.bf16.mxu0 0
      %322 = vmatpush1.bf16.msra.mxu0 %v302
      %323 = vmatprep.subr.bf16.mxu0 0
      %324 = vmatpush1.bf16.msra.mxu0 %v303
      %325 = vmatprep.subr.bf16.mxu0 0
      %326 = vmatpush1.bf16.msra.mxu0 %v304
      %327 = vmatprep.subr.bf16.mxu0 0
      %328 = vmatpush1.bf16.msra.mxu0 %v305
      %329 = vmatprep.subr.bf16.mxu0 0
      %330 = vmatpush1.bf16.msra.mxu0 %v306
      %331 = vmatprep.subr.bf16.mxu0 0
      %332 = vmatpush1.bf16.msra.mxu0 0
      %333 = vmatprep.subr.bf16.mxu0 0
      %334 = vmatpush1.bf16.msra.mxu0 0
      %335 = vmatprep.subr.bf16.mxu0 0
      %336 = vmatpush1.bf16.msra.mxu0 0
      %337 = vmatprep.subr.bf16.mxu0 0
      %338 = vmatpush1.bf16.msra.mxu0 0
      %339 = vmatprep.subr.bf16.mxu0 0
      %340 = vmatpush1.bf16.msra.mxu0 0
      %341 = vmatprep.subr.bf16.mxu0 0
      %342 = vmatpush1.bf16.msra.mxu0 0
      %343 = vmatprep.subr.bf16.mxu0 0
      %344 = vmatpush1.bf16.msra.mxu0 0
      %345 = vmatprep.subr.bf16.mxu0 0
      %346 = vmatpush1.bf16.msra.mxu0 0
      %347 = vmatprep.mubr.bf16.mxu0 0
      %348 = vmatmul.mubr.bf16.gmra.mrb[0].mxu0 %v246
      %v349 = vpop.f32.mrb[0].mxu0
      %v350 = vadd.f32 %v266, %v349
      %v351 = vpop.f32.mrb[0].mxu0
      %v352 = vpop.f32.mrb[0].mxu0
      %v353 = vpop.f32.mrb[0].mxu0
      %354 = vdwg.mxu0
      %v355 = vmul.f32 %v350, 0.7978846
      %v356 = vmul.f32 %v350, 0.044715
      %v357 = vmul.f32 %v356, %v350
      %v358 = vadd.f32 %v357, 1.0
      %v359 = vmul.f32 %v355, %v358
      %v360 = vmul.f32 %v350, 0.5
      %v361 = vtanh.pop %v359
      %v362 = vadd.f32 %v361, 1.0
      %v363 = vmul.f32 %v360, %v362
      %v364 = vpack.c.bf16 %v363, %v363
      %v365 = vld [vmem:[%s4] sm:$0xf]
      %v366 = vld [vmem:[%s4 + $0x4] sm:$0xf]
      %v367 = vld [vmem:[%s4 + $0x8] sm:$0xf]
      %v368 = vld [vmem:[%s4 + $0xc] sm:$0xf]
      %v369 = vld [vmem:[%s4 + $0x10] sm:$0xf]
      %v370 = vld [vmem:[%s4 + $0x14] sm:$0xf]
      %v371 = vld [vmem:[%s4 + $0x18] sm:$0xf]
      %v372 = vld [vmem:[%s4 + $0x1c] sm:$0xf]
      %v373 = vlaneseq
      %v374 = vshrl.u32 %v373, 7
      %v375 = vsub.s32 1, %v374
      %v376 = vrot.slane %v223, %v375
      %v385 = vunpack.c.l.b16 %v365
      %v386 = vunpack.c.l.b16 %v366
      %v387 = vunpack.c.l.b16 %v367
      %v388 = vunpack.c.l.b16 %v368
      %v389 = vunpack.c.l.b16 %v369
      %v390 = vunpack.c.l.b16 %v370
      %v391 = vunpack.c.l.b16 %v371
      %v392 = vunpack.c.l.b16 %v372
      %v393 = vpack.c.b16 %v386, %v385
      %v394 = vpack.c.b16 %v388, %v387
      %v395 = vpack.c.b16 %v390, %v389
      %v396 = vpack.c.b16 %v392, %v391
      %vm401 = vcmask 523264
      %v403 = vsel %vm401, %v364, 0
      %405 = vmatprep.subr.bf16.mxu0 0
      %406 = vmatpush1.bf16.msra.mxu0 %v393
      %407 = vmatprep.subr.bf16.mxu0 0
      %408 = vmatpush1.bf16.msra.mxu0 %v394
      %409 = vmatprep.subr.bf16.mxu0 0
      %410 = vmatpush1.bf16.msra.mxu0 %v395
      %411 = vmatprep.subr.bf16.mxu0 0
      %412 = vmatpush1.bf16.msra.mxu0 %v396
      %413 = vmatprep.subr.bf16.mxu0 0
      %414 = vmatpush1.bf16.msra.mxu0 0
      %415 = vmatprep.subr.bf16.mxu0 0
      %416 = vmatpush1.bf16.msra.mxu0 0
      %417 = vmatprep.subr.bf16.mxu0 0
      %418 = vmatpush1.bf16.msra.mxu0 0
      %419 = vmatprep.subr.bf16.mxu0 0
      %420 = vmatpush1.bf16.msra.mxu0 0
      %421 = vmatprep.subr.bf16.mxu0 0
      %422 = vmatpush1.bf16.msra.mxu0 0
      %423 = vmatprep.subr.bf16.mxu0 0
      %424 = vmatpush1.bf16.msra.mxu0 0
      %425 = vmatprep.subr.bf16.mxu0 0
      %426 = vmatpush1.bf16.msra.mxu0 0
      %427 = vmatprep.subr.bf16.mxu0 0
      %428 = vmatpush1.bf16.msra.mxu0 0
      %429 = vmatprep.subr.bf16.mxu0 0
      %430 = vmatpush1.bf16.msra.mxu0 0
      %431 = vmatprep.subr.bf16.mxu0 0
      %432 = vmatpush1.bf16.msra.mxu0 0
      %433 = vmatprep.subr.bf16.mxu0 0
      %434 = vmatpush1.bf16.msra.mxu0 0
      %435 = vmatprep.subr.bf16.mxu0 0
      %436 = vmatpush1.bf16.msra.mxu0 0
      %437 = vmatprep.mubr.bf16.mxu0 0
      %438 = vmatmul.mubr.bf16.gmra.mrb[0].mxu0 %v403
      %v439 = vpop.f32.mrb[0].mxu0
      %v440 = vadd.f32 %v376, %v439
      %v441 = vpop.f32.mrb[0].mxu0
      %v442 = vpop.f32.mrb[0].mxu0
      %v443 = vpop.f32.mrb[0].mxu0
      %444 = vdwg.mxu0
      %v445 = vmul.f32 %v440, 0.7978846
      %v446 = vmul.f32 %v440, 0.044715
      %v447 = vmul.f32 %v446, %v440
      %v448 = vadd.f32 %v447, 1.0
      %v449 = vmul.f32 %v445, %v448
      %v450 = vmul.f32 %v440, 0.5
      %v451 = vtanh.pop %v449
      %v452 = vadd.f32 %v451, 1.0
      %v453 = vmul.f32 %v450, %v452
      %v454 = vadd.f32 %v453, %v363
      %v455 = vsel %vm401, %v454, 0.0
      %456 = vadd.xlane.f32.xlu0 %v455
      %v457 = vpop.xlane.xlu0 %456
      %v458 = vrcp.pop 64.0
      %v459 = vmul.f32 %v457, %v458
      %v460 = vsub.f32 %v454, %v459
      %v461 = vmul.f32 %v460, %v460
      %v462 = vsel %vm401, %v461, 0.0
      %463 = vadd.xlane.f32.xlu0 %v462
      %v464 = vpop.xlane.xlu0 %463
      %v465 = vmul.f32 %v464, %v458
      %v466 = vadd.f32 %v465, 1e-05
      %v467 = vrsqrt.pop %v466
      %v468 = vmul.f32 %v460, %v467
      %v469 = vlaneseq
      %v470 = vshrl.u32 %v469, 7
      %v471 = vsub.s32 2, %v470
      %v472 = vrot.slane %v223, %v471
      %v473 = vmul.f32 %v468, %v472
      %v474 = vlaneseq
      %v475 = vshrl.u32 %v474, 7
      %v476 = vsub.s32 3, %v475
      %v477 = vrot.slane %v223, %v476
      %v478 = vadd.f32 %v473, %v477
      %v479 = vlaneseq
      %v480 = vshrl.u32 %v479, 7
      %v481 = vsub.s32 4, %v480
      %v482 = vrot.slane %v223, %v481
      %v483 = vmul.f32 %v478, %v482
      %v484 = vsel %vm401, %v483, 0.0
      %485 = vadd.xlane.f32.xlu0 %v484
      %v486 = vpop.xlane.xlu0 %485
      %v487 = vlaneseq
      %v488 = vshrl.u32 %v487, 7
      %v489 = vsub.s32 5, %v488
      %v490 = vrot.slane %v223, %v489
      %v491 = vadd.f32 %v486, %v490
      %vm492 = vcmask 7168
      %493 = vst.msk [vmem:[%s219] sm:$0xff] %vm492, %v491
      %p494 = scmp.lt.s32.totalorder %s16, 1
      %s495 = scalar_select %p494, %s16, 1
      %s496 = smul.addr %s495, 8
      %s497 = scalar_lea.vmem %s5, %s496
      // Predicated region
      $region41: #{tpu_custom_call.1} parent=39 // pred_check
        %p498 = pneg %p144
      $region42: #{tpu_custom_call.1} parent=39 // pred_check_branch
        %500 = sbr.rel (%p498) target = $region44
      $region43: #{tpu_custom_call.1} parent=39 // pred_region
        _
      $region44: #{tpu_custom_call.1} parent=39 // pred_fallthru
        _
    $region40: #{tpu_custom_call.1} parent=5 // pred_fallthru
      _
    %p501 = scmp.le.s32.totalorder 2, %s11
    // Predicated region
    $region45: #{tpu_custom_call.1} parent=5 // pred_check
      %p502 = pneg %p501
    $region46: #{tpu_custom_call.1} parent=5 // pred_check_branch
      %504 = sbr.rel (%p502) target = $region48
    $region47: #{tpu_custom_call.1} parent=5 // pred_region
      %s505 = ssub.s32 %s11, 2
      // Predicated region
      $region49: #{tpu_custom_call.1} parent=47 // pred_check
        %p506 = pneg %p150
      $region50: #{tpu_custom_call.1} parent=47 // pred_check_branch
        %508 = sbr.rel (%p506) target = $region52
      $region51: #{tpu_custom_call.1} parent=47 // pred_region
        %p509 = scmp.lt.s32.totalorder %s17, 1
        %s510 = scalar_select %p509, %s17, 1
        %s511 = smul.addr %s510, 8
        %s512 = scalar_lea.vmem %s5, %s511
      $region52: #{tpu_custom_call.1} parent=47 // pred_fallthru
        _
    $region48: #{tpu_custom_call.1} parent=5 // pred_fallthru
      _
  $region6: #{tpu_custom_call.1} parent=0 // loop_footer
    %s15 = sadd.s32 1, %s11
  $region7: #{tpu_custom_call.1} parent=0 // loop_footer_branch
    %10 = sbr.rel target = $region3
  $region8: #{tpu_custom_call.1} parent=0 // loop_exit
    _

</llo_original>
